<compile_context>
chip_gen: v6e
topology: v6e:2x2x1
jax: 0.10.0
libtpu: 0.0.40
codegen_flags: <defaults>
</compile_context>

<pallas_src>
import jax
import jax.numpy as jnp
from jax.experimental import pallas as pl
from jax.experimental.pallas import tpu as pltpu

_LANE = 128
_SUBLANE = 8


def _loss_kernel(nrows_ref, pred_ref, y_ref, sq_ref, l1_ref):
    c = pl.program_id(0)                 # core-split axis ("parallel")
    i = pl.program_id(1)                 # block sweep within this core ("arbitrary")
    blocks_per_core = pl.num_programs(1)

    @pl.when(i == 0)
    def _init():
        sq_ref[...] = jnp.zeros_like(sq_ref)
        l1_ref[...] = jnp.zeros_like(l1_ref)

    tile_rows = pred_ref.shape[0]

    # Nominal global row index of every element's row. Rows >= nrows are either
    # the ragged tail of the last real block or a phantom (clamped) block on
    # the second core; both must contribute exactly zero to both sums.
    row0 = (c * blocks_per_core + i) * tile_rows
    row_ids = row0 + jax.lax.broadcasted_iota(jnp.int32, pred_ref.shape, 0)
    valid = row_ids < nrows_ref[0]

    p = jnp.where(valid, pred_ref[...].astype(jnp.float32), 0.0)
    y = jnp.where(valid, y_ref[...].astype(jnp.float32), 0.0)
    d = p - y

    # Vreg-shaped partial sums (VALU adds only); cross-lane reduce happens once
    # in the wrapper.
    part_sq = jnp.sum((d * d).reshape(-1, _SUBLANE, _LANE), axis=0)
    part_l1 = jnp.sum(jnp.abs(p).reshape(-1, _SUBLANE, _LANE), axis=0)
    sq_ref[...] += part_sq[None, :, :]
    l1_ref[...] += part_l1[None, :, :]


def my_loss(predicted_y, train_y, regularization, *, tile_rows=1024):
    """MSE(predicted_y, train_y) + regularization * ||predicted_y||_1 (scalar f32)."""
    assert predicted_y.shape == train_y.shape
    numel = predicted_y.size

    flat_p = predicted_y.reshape(-1)
    flat_y = train_y.reshape(-1)

    # Only pad when numel is not lane-aligned (lane-aligned inputs reshape for
    # free; padding forces an HBM copy, so we avoid it on the common path).
    if numel % _LANE != 0:
        pad = _LANE - numel % _LANE
        flat_p = jnp.pad(flat_p, (0, pad))
        flat_y = jnp.pad(flat_y, (0, pad))
    rows = flat_p.size // _LANE
    p2 = flat_p.reshape(rows, _LANE)
    y2 = flat_y.reshape(rows, _LANE)

    # Biggest block that fits the data, always a multiple of the 8-row sublane.
    rows_rounded = max(_SUBLANE, ((rows + _SUBLANE - 1) // _SUBLANE) * _SUBLANE)
    tr = min(tile_rows, rows_rounded)
    num_blocks = pl.cdiv(rows, tr)
    blocks_per_core = pl.cdiv(num_blocks, 2)   # leading "parallel" axis of 2 (v7x megacore)

    def in_map(c, i, nrows):
        # Clamp so a phantom block (odd num_blocks, second core) never DMAs out
        # of bounds; its contribution is masked to zero inside the kernel.
        return (jnp.minimum(c * blocks_per_core + i, num_blocks - 1), 0)

    def out_map(c, i, nrows):
        return (c, 0, 0)

    nrows = jnp.array([rows], dtype=jnp.int32)

    sq_part, l1_part = pl.pallas_call(
        _loss_kernel,
        out_shape=(
            jax.ShapeDtypeStruct((2, _SUBLANE, _LANE), jnp.float32),
            jax.ShapeDtypeStruct((2, _SUBLANE, _LANE), jnp.float32),
        ),
        grid_spec=pltpu.PrefetchScalarGridSpec(
            num_scalar_prefetch=1,
            grid=(2, blocks_per_core),
            in_specs=[
                pl.BlockSpec((tr, _LANE), in_map),
                pl.BlockSpec((tr, _LANE), in_map),
            ],
            out_specs=(
                pl.BlockSpec((1, _SUBLANE, _LANE), out_map),
                pl.BlockSpec((1, _SUBLANE, _LANE), out_map),
            ),
        ),
        compiler_params=pltpu.CompilerParams(
            dimension_semantics=("parallel", "arbitrary")),
    )(nrows, p2, y2)

    # Tiny final reductions (2*8*128 elements each) + combine.
    mse = jnp.sum(sq_part) / jnp.float32(numel)
    return mse + jnp.float32(regularization) * jnp.sum(l1_part)


if __name__ == "__main__":
    key = jax.random.PRNGKey(0)
    k1, k2 = jax.random.split(key)

    # Small shapes consistent with the module (any tensor pair of equal shape).
    B, C, H, W = 2, 4, 16, 16
    predicted_y = jax.random.normal(k1, (B, C, H, W), dtype=jnp.float32)
    train_Y = jax.random.normal(k2, (B, C, H, W), dtype=jnp.float32)
    regularization = 0.01

    loss = my_loss(predicted_y, train_Y, regularization)
    loss = jax.block_until_ready(loss)

    # Reference check (pure JAX, mirrors F.mse_loss + reg * torch.norm(p=1)).
    ref = jnp.mean((predicted_y - train_Y) ** 2) + regularization * jnp.sum(
        jnp.abs(predicted_y))
    assert jnp.allclose(loss, ref, rtol=1e-5, atol=1e-5), (loss, ref)

    print("KERNEL_OK")
</pallas_src>

<mosaic_0001>
module attributes {stable_mosaic.version = 11 : i64} {
  func.func @_loss_kernel(%arg0: i32, %arg1: i32, %arg2: memref<1xi32, #tpu.memory_space<smem>>, %arg3: memref<16x128xf32, #tpu.memory_space<vmem>>, %arg4: memref<16x128xf32, #tpu.memory_space<vmem>>, %arg5: memref<1x8x128xf32, #tpu.memory_space<vmem>>, %arg6: memref<1x8x128xf32, #tpu.memory_space<vmem>>) attributes {dimension_semantics = [#tpu.dimension_semantics<parallel>, #tpu.dimension_semantics<arbitrary>], iteration_bounds = array<i64: 2, 1>, scalar_prefetch = 1 : i64, scratch_operands = 0 : i64, tpu.core_type = #tpu.core_type<tc>, window_params = [{transform_indices = @transform_0, window_bounds = array<i64: 16, 128>}, {transform_indices = @transform_1, window_bounds = array<i64: 16, 128>}, {transform_indices = @transform_2, window_bounds = array<i64: 1, 8, 128>}, {transform_indices = @transform_3, window_bounds = array<i64: 1, 8, 128>}]} {
    %c0_i32 = arith.constant 0 : i32
    %0 = arith.cmpi eq, %arg1, %c0_i32 : i32
    %1 = arith.extui %0 : i1 to i32
    %c0_i32_0 = arith.constant 0 : i32
    %2 = arith.cmpi ne, %1, %c0_i32_0 : i32
    scf.if %2 {
      %cst_20 = arith.constant 0.000000e+00 : f32
      %33 = vector.broadcast %cst_20 : f32 to vector<1x8x128xf32>
      %c0_21 = arith.constant 0 : index
      %c0_22 = arith.constant 0 : index
      %c0_23 = arith.constant 0 : index
      %34 = vector.load %arg5[%c0_21, %c0_22, %c0_23] : memref<1x8x128xf32, #tpu.memory_space<vmem>>, vector<1x8x128xf32>
      tpu.vector_store %arg5[%c0_21, %c0_22, %c0_23], %33 {strides = array<i32>} : memref<1x8x128xf32, #tpu.memory_space<vmem>>, vector<1x8x128xf32>,
      %cst_24 = arith.constant 0.000000e+00 : f32
      %35 = vector.broadcast %cst_24 : f32 to vector<1x8x128xf32>
      %c0_25 = arith.constant 0 : index
      %c0_26 = arith.constant 0 : index
      %c0_27 = arith.constant 0 : index
      %36 = vector.load %arg6[%c0_25, %c0_26, %c0_27] : memref<1x8x128xf32, #tpu.memory_space<vmem>>, vector<1x8x128xf32>
      tpu.vector_store %arg6[%c0_25, %c0_26, %c0_27], %35 {strides = array<i32>} : memref<1x8x128xf32, #tpu.memory_space<vmem>>, vector<1x8x128xf32>,
    } else {
    }
    %c1_i32 = arith.constant 1 : i32
    %3 = arith.muli %arg0, %c1_i32 : i32
    %4 = arith.addi %3, %arg1 : i32
    %c16_i32 = arith.constant 16 : i32
    %5 = arith.muli %4, %c16_i32 : i32
    %6 = tpu.iota {dimensions = array<i32: 0>} : vector<16x128xi32>
    %7 = vector.broadcast %5 : i32 to vector<16x128xi32>
    %8 = arith.addi %7, %6 : vector<16x128xi32>
    %c0 = arith.constant 0 : index
    %9 = memref.load %arg2[%c0] : memref<1xi32, #tpu.memory_space<smem>>
    %10 = vector.broadcast %9 : i32 to vector<16x128xi32>
    %11 = arith.cmpi slt, %8, %10 : vector<16x128xi32>
    %c0_1 = arith.constant 0 : index
    %c0_2 = arith.constant 0 : index
    %12 = vector.load %arg3[%c0_1, %c0_2] : memref<16x128xf32, #tpu.memory_space<vmem>>, vector<16x128xf32>
    %cst = arith.constant 0.000000e+00 : f32
    %13 = vector.broadcast %cst : f32 to vector<16x128xf32>
    %14 = arith.select %11, %12, %13 : vector<16x128xi1>, vector<16x128xf32>
    %c0_3 = arith.constant 0 : index
    %c0_4 = arith.constant 0 : index
    %15 = vector.load %arg4[%c0_3, %c0_4] : memref<16x128xf32, #tpu.memory_space<vmem>>, vector<16x128xf32>
    %cst_5 = arith.constant 0.000000e+00 : f32
    %16 = vector.broadcast %cst_5 : f32 to vector<16x128xf32>
    %17 = arith.select %11, %15, %16 : vector<16x128xi1>, vector<16x128xf32>
    %18 = arith.subf %14, %17 : vector<16x128xf32>
    %19 = arith.mulf %18, %18 : vector<16x128xf32>
    %20 = vector.shape_cast %19 : vector<16x128xf32> to vector<2x8x128xf32>
    %cst_6 = arith.constant dense<0.000000e+00> : vector<8x128xf32>
    %21 = vector.multi_reduction <add>, %20, %cst_6 [0] : vector<2x8x128xf32> to vector<8x128xf32>
    %22 = math.absf %14 : vector<16x128xf32>
    %23 = vector.shape_cast %22 : vector<16x128xf32> to vector<2x8x128xf32>
    %cst_7 = arith.constant dense<0.000000e+00> : vector<8x128xf32>
    %24 = vector.multi_reduction <add>, %23, %cst_7 [0] : vector<2x8x128xf32> to vector<8x128xf32>
    %c0_8 = arith.constant 0 : index
    %c0_9 = arith.constant 0 : index
    %c0_10 = arith.constant 0 : index
    %25 = vector.load %arg5[%c0_8, %c0_9, %c0_10] : memref<1x8x128xf32, #tpu.memory_space<vmem>>, vector<1x8x128xf32>
    %26 = vector.shape_cast %21 : vector<8x128xf32> to vector<1x8x128xf32>
    %27 = arith.addf %25, %26 : vector<1x8x128xf32>
    %c0_11 = arith.constant 0 : index
    %c0_12 = arith.constant 0 : index
    %c0_13 = arith.constant 0 : index
    %28 = vector.load %arg5[%c0_11, %c0_12, %c0_13] : memref<1x8x128xf32, #tpu.memory_space<vmem>>, vector<1x8x128xf32>
    tpu.vector_store %arg5[%c0_11, %c0_12, %c0_13], %27 {strides = array<i32>} : memref<1x8x128xf32, #tpu.memory_space<vmem>>, vector<1x8x128xf32>,
    %c0_14 = arith.constant 0 : index
    %c0_15 = arith.constant 0 : index
    %c0_16 = arith.constant 0 : index
    %29 = vector.load %arg6[%c0_14, %c0_15, %c0_16] : memref<1x8x128xf32, #tpu.memory_space<vmem>>, vector<1x8x128xf32>
    %30 = vector.shape_cast %24 : vector<8x128xf32> to vector<1x8x128xf32>
    %31 = arith.addf %29, %30 : vector<1x8x128xf32>
    %c0_17 = arith.constant 0 : index
    %c0_18 = arith.constant 0 : index
    %c0_19 = arith.constant 0 : index
    %32 = vector.load %arg6[%c0_17, %c0_18, %c0_19] : memref<1x8x128xf32, #tpu.memory_space<vmem>>, vector<1x8x128xf32>
    tpu.vector_store %arg6[%c0_17, %c0_18, %c0_19], %31 {strides = array<i32>} : memref<1x8x128xf32, #tpu.memory_space<vmem>>, vector<1x8x128xf32>,
    return
  }
  func.func @transform_0(%arg0: i32, %arg1: i32, %arg2: memref<1xi32, #tpu.memory_space<smem>>) -> (i32, i32) {
    %c1_i32 = arith.constant 1 : i32
    %0 = arith.muli %arg0, %c1_i32 : i32
    %1 = arith.addi %0, %arg1 : i32
    %c0_i32 = arith.constant 0 : i32
    %2 = arith.minsi %1, %c0_i32 : i32
    %c0_i32_0 = arith.constant 0 : i32
    %c0_i32_1 = arith.constant 0 : i32
    return %2, %c0_i32_0 : i32, i32
  }
  func.func @transform_1(%arg0: i32, %arg1: i32, %arg2: memref<1xi32, #tpu.memory_space<smem>>) -> (i32, i32) {
    %c1_i32 = arith.constant 1 : i32
    %0 = arith.muli %arg0, %c1_i32 : i32
    %1 = arith.addi %0, %arg1 : i32
    %c0_i32 = arith.constant 0 : i32
    %2 = arith.minsi %1, %c0_i32 : i32
    %c0_i32_0 = arith.constant 0 : i32
    %c0_i32_1 = arith.constant 0 : i32
    return %2, %c0_i32_0 : i32, i32
  }
  func.func @transform_2(%arg0: i32, %arg1: i32, %arg2: memref<1xi32, #tpu.memory_space<smem>>) -> (i32, i32, i32) {
    %c0_i32 = arith.constant 0 : i32
    %c0_i32_0 = arith.constant 0 : i32
    %c0_i32_1 = arith.constant 0 : i32
    return %arg0, %c0_i32, %c0_i32_0 : i32, i32, i32
  }
  func.func @transform_3(%arg0: i32, %arg1: i32, %arg2: memref<1xi32, #tpu.memory_space<smem>>) -> (i32, i32, i32) {
    %c0_i32 = arith.constant 0 : i32
    %c0_i32_0 = arith.constant 0 : i32
    %c0_i32_1 = arith.constant 0 : i32
    return %arg0, %c0_i32, %c0_i32_0 : i32, i32, i32
  }
}

</mosaic_0001>

<llo_original>
// kernel: tpu_custom_call.1
$region0: #{tpu_custom_call.1}
  #allocation0 [shape = 'u32[]', space=smem, size = 0x4, offset = 0x4, fixed_abs, tag = 'smem constant byte address 0x4 - core index']
  #allocation1 [shape = 'u32[144,128]{1,0:T(1,128)}', space=vmem, size = 0x12000, scoped, tag = 'internal scratch']
  #allocation2 [shape = 's32[1]{0}', space=sflag, size = 0x4, scoped, tag = 'scoped memory for tpu_custom_call.1']
  #allocation3 [shape = 's32[1]{0:T(128)S(6)}', space=smem, size = 0x200, scoped, tag = 'prefetched SMEM operand 0']
  %s0 = inlined_call_operand.<no memory space> [shape: s32[1], index: 0, kind: input, shape index: {}]
  %s1 = inlined_call_operand.hbm [shape: f32[16,128], index: 1, kind: input, shape index: {}]
  %s2 = inlined_call_operand.hbm [shape: f32[16,128], index: 2, kind: input, shape index: {}]
  %s3 = inlined_call_operand.hbm [shape: f32[2,8,128], index: 3, kind: output, shape index: {0}]
  %s4 = inlined_call_operand.hbm [shape: f32[2,8,128], index: 4, kind: output, shape index: {1}]
  %5 = xla_tuple %s3, %s4
  %s6 = sld [smem:[#allocation0]]
  $region61: #{tpu_custom_call.1} parent=0
    _
  %s8 = ssub.s32 1, %s6
  %s9 = scalar_select 0, %s8, %s6
  %10 = sst [smem:[#allocation3]] %s0
  $region1: #{tpu_custom_call.1} parent=0
    #allocation4 [shape = 'u8[16384]{0}', space=vmem, size = 0x4000, scoped, tag = 'input window, operand 1']
    #allocation5 [shape = 's32[2]{0}', space=sflag, size = 0x8, scoped, tag = 'scoped memory for tpu_custom_call.1']
    #allocation6 [shape = 's32[2]{0}', space=sflag, size = 0x8, scoped, tag = 'scoped memory for tpu_custom_call.1']
    #allocation7 [shape = 'u8[16384]{0}', space=vmem, size = 0x4000, scoped, tag = 'input window, operand 2']
    #allocation8 [shape = 's32[2]{0}', space=sflag, size = 0x8, scoped, tag = 'scoped memory for tpu_custom_call.1']
    #allocation9 [shape = 'u8[8192]{0}', space=vmem, size = 0x2000, scoped, tag = 'output window, operand 0']
    #allocation10 [shape = 'u8[8192]{0}', space=vmem, size = 0x2000, scoped, tag = 'output window, operand 1']
    #allocation11 [shape = 's32[2]{0}', space=sflag, size = 0x8, scoped, tag = 'scoped memory for tpu_custom_call.1']
    %11 = vsyncpa [#allocation5], 0
    %s12 = scalar_lea.sflag [#allocation5], 1
    %13 = vsyncpa %s12, 0
    %14 = vsyncpa [#allocation8], 0
    %s15 = scalar_lea.sflag [#allocation8], 1
    %16 = vsyncpa %s15, 0
    %17 = vsyncpa [#allocation6], 0
    %s18 = scalar_lea.sflag [#allocation6], 1
    %19 = vsyncpa %s18, 0
    %20 = vsyncpa [#allocation11], 0
    %s21 = scalar_lea.sflag [#allocation11], 1
    %22 = vsyncpa %s21, 0
    loop: start=0, step=1, limit=4
    $region2: #{tpu_custom_call.1} parent=1 // loop_pre_header
      _
    $region3: #{tpu_custom_call.1} parent=1 // loop_header
      %s24 = sphi 0, %s28
      %p25 = scmp.ge.s32.totalorder %s24, 4
      %s31 = sphi 0, %s43
      %s32 = sphi 0, %s39
      %s33 = sphi 0, %s31
      %s34 = sphi 0, %s32
      %s35 = sphi 0, %s33
      %s36 = sphi 0, %s34
      %s52 = sphi 0, %s54
      %s55 = sphi 0, %s52
      %s56 = sphi 0, %s55
      %s72 = sphi 0, %s56
      %s84 = sphi 0, %s86
      %s87 = sphi 0, %s84
      %s88 = sphi 0, %s87
      %s104 = sphi 0, %s88
      %s110 = sphi 0, %s112
      %s113 = sphi 0, %s110
      %s114 = sphi 0, %s113
      %s130 = sphi 0, %s114
      %s136 = sphi 0, %s138
      %s139 = sphi 0, %s136
      %s140 = sphi 0, %s139
      %s156 = sphi 0, %s140
    $region4: #{tpu_custom_call.1} parent=1 // loop_header_branch
      %27 = sbr.rel (%p25) target = $region8
    $region5: #{tpu_custom_call.1} parent=1 // loop_body
      %s29 = ssub.s32 %s24, 1
      %s30 = ssub.s32 %s24, 2
      %s37 = sadd.s32 1, %s32
      %p38 = scmp.ge.s32.totalorder %s37, 1
      %s39 = scalar_select %p38, 0, %s37
      %s40 = sadd.s32 1, %s31
      %s41 = scalar_select %p38, %s40, %s31
      %p42 = scmp.ge.s32.totalorder %s41, 2
      %s43 = scalar_select %p42, 0, %s41
      %s44 = sadd.s32 %s31, %s32
      %p45 = scmp.lt.s32.totalorder %s44, 0
      %s46 = scalar_select %p45, %s44, 0
      %s47 = sadd.s32 %s43, %s39
      %p48 = scmp.lt.s32.totalorder %s47, 0
      %s49 = scalar_select %p48, %s47, 0
      %s50 = ssub.s32 %s46, %s49
      %p51 = scmp.eq.s32.totalorder %s50, 0
      %s53 = sadd.s32 %s52, 1
      %s54 = scalar_select %p51, %s52, %s53
      %p57 = pneg %p51
      %p58 = scmp.eq.s32.totalorder %s24, 1
      %p59 = por %p57, %p58
      %p60 = scmp.ne.s32.totalorder %s52, %s55
      %p61 = scmp.eq.s32.totalorder %s24, 0
      %p62 = por %p60, %p61
      %p63 = scmp.ne.s32.totalorder %s52, %s55
      %p64 = scmp.eq.s32.totalorder %s29, 1
      %p65 = por %p63, %p64
      %p66 = scmp.ne.s32.totalorder %s55, %s56
      %p67 = scmp.eq.s32.totalorder %s29, 0
      %p68 = por %p66, %p67
      %p69 = scmp.ne.s32.totalorder %s55, %s56
      %p70 = scmp.eq.s32.totalorder %s30, 1
      %p71 = por %p69, %p70
      %p73 = scmp.ne.s32.totalorder %s56, %s72
      %p74 = scmp.eq.s32.totalorder %s30, 0
      %p75 = por %p73, %p74
      %s76 = sadd.s32 %s31, %s32
      %p77 = scmp.lt.s32.totalorder %s76, 0
      %s78 = scalar_select %p77, %s76, 0
      %s79 = sadd.s32 %s43, %s39
      %p80 = scmp.lt.s32.totalorder %s79, 0
      %s81 = scalar_select %p80, %s79, 0
      %s82 = ssub.s32 %s78, %s81
      %p83 = scmp.eq.s32.totalorder %s82, 0
      %s85 = sadd.s32 %s84, 1
      %s86 = scalar_select %p83, %s84, %s85
      %p89 = pneg %p83
      %p90 = scmp.eq.s32.totalorder %s24, 1
      %p91 = por %p89, %p90
      %p92 = scmp.ne.s32.totalorder %s84, %s87
      %p93 = scmp.eq.s32.totalorder %s24, 0
      %p94 = por %p92, %p93
      %p95 = scmp.ne.s32.totalorder %s84, %s87
      %p96 = scmp.eq.s32.totalorder %s29, 1
      %p97 = por %p95, %p96
      %p98 = scmp.ne.s32.totalorder %s87, %s88
      %p99 = scmp.eq.s32.totalorder %s29, 0
      %p100 = por %p98, %p99
      %p101 = scmp.ne.s32.totalorder %s87, %s88
      %p102 = scmp.eq.s32.totalorder %s30, 1
      %p103 = por %p101, %p102
      %p105 = scmp.ne.s32.totalorder %s88, %s104
      %p106 = scmp.eq.s32.totalorder %s30, 0
      %p107 = por %p105, %p106
      %s108 = ssub.s32 %s31, %s43
      %p109 = scmp.eq.s32.totalorder %s108, 0
      %s111 = sadd.s32 %s110, 1
      %s112 = scalar_select %p109, %s110, %s111
      %p115 = pneg %p109
      %p116 = scmp.eq.s32.totalorder %s24, 1
      %p117 = por %p115, %p116
      %p118 = scmp.ne.s32.totalorder %s110, %s113
      %p119 = scmp.eq.s32.totalorder %s24, 0
      %p120 = por %p118, %p119
      %p121 = scmp.ne.s32.totalorder %s110, %s113
      %p122 = scmp.eq.s32.totalorder %s29, 1
      %p123 = por %p121, %p122
      %p124 = scmp.ne.s32.totalorder %s113, %s114
      %p125 = scmp.eq.s32.totalorder %s29, 0
      %p126 = por %p124, %p125
      %p127 = scmp.ne.s32.totalorder %s113, %s114
      %p128 = scmp.eq.s32.totalorder %s30, 1
      %p129 = por %p127, %p128
      %p131 = scmp.ne.s32.totalorder %s114, %s130
      %p132 = scmp.eq.s32.totalorder %s30, 0
      %p133 = por %p131, %p132
      %s134 = ssub.s32 %s31, %s43
      %p135 = scmp.eq.s32.totalorder %s134, 0
      %s137 = sadd.s32 %s136, 1
      %s138 = scalar_select %p135, %s136, %s137
      %p141 = pneg %p135
      %p142 = scmp.eq.s32.totalorder %s24, 1
      %p143 = por %p141, %p142
      %p144 = scmp.ne.s32.totalorder %s136, %s139
      %p145 = scmp.eq.s32.totalorder %s24, 0
      %p146 = por %p144, %p145
      %p147 = scmp.ne.s32.totalorder %s136, %s139
      %p148 = scmp.eq.s32.totalorder %s29, 1
      %p149 = por %p147, %p148
      %p150 = scmp.ne.s32.totalorder %s139, %s140
      %p151 = scmp.eq.s32.totalorder %s29, 0
      %p152 = por %p150, %p151
      %p153 = scmp.ne.s32.totalorder %s139, %s140
      %p154 = scmp.eq.s32.totalorder %s30, 1
      %p155 = por %p153, %p154
      %p157 = scmp.ne.s32.totalorder %s140, %s156
      %p158 = scmp.eq.s32.totalorder %s30, 0
      %p159 = por %p157, %p158
      %p160 = scmp.le.s32.totalorder 1, %s24
      %p161 = scmp.lt.s32.totalorder %s24, 3
      %p162 = pnand %p160, %p161
      %p163 = pneg %p162
      // Predicated region
      $region9: #{tpu_custom_call.1} parent=5 // pred_check
        _
      $region10: #{tpu_custom_call.1} parent=5 // pred_check_branch
        %165 = sbr.rel (%p162) target = $region12
      $region11: #{tpu_custom_call.1} parent=5 // pred_region
        %s166 = ssub.s32 %s24, 1
      $region12: #{tpu_custom_call.1} parent=5 // pred_fallthru
        _
      %p167 = scmp.lt.s32.totalorder %s24, 2
      // Predicated region
      $region13: #{tpu_custom_call.1} parent=5 // pred_check
        %p168 = pneg %p167
      $region14: #{tpu_custom_call.1} parent=5 // pred_check_branch
        %170 = sbr.rel (%p168) target = $region16
      $region15: #{tpu_custom_call.1} parent=5 // pred_region
        // Predicated region
        $region17: #{tpu_custom_call.1} parent=15 // pred_check
          %p171 = pneg %p62
        $region18: #{tpu_custom_call.1} parent=15 // pred_check_branch
          %173 = sbr.rel (%p171) target = $region20
        $region19: #{tpu_custom_call.1} parent=15 // pred_region
          %s174 = sand.u32 %s52, 1
          %s175 = scalar_lea.sflag [#allocation5], %s174
          %s176 = sand.u32 %s52, 1
          %s177 = smul.addr %s176, 16
          %s178 = scalar_lea.vmem [#allocation4], %s177
          %s179 = sadd.s32 %s31, %s32
          %p180 = scmp.lt.s32.totalorder %s179, 0
          %s181 = scalar_select %p180, %s179, 0
          %s182 = smul.u32 2, %s181
          %s184 = ssub.s32 256, 256
          %185 = vsyncadd %s175, %s184
          %s186 = smul.addr %s182, 128
          %s187 = scalar_lea.hbm %s1, %s186
          %s188 = sshll.u32 %s178, 4
          %s189 = int_to_ptr.vmem [resolvable:$true] %s188
          %194 = dma.hbm_to_vmem [thread:$0]  %s187, 256, %s189, %s175, 128, 128, 8
        $region20: #{tpu_custom_call.1} parent=15 // pred_fallthru
          _
        // Predicated region
        $region21: #{tpu_custom_call.1} parent=15 // pred_check
          %p195 = pneg %p94
        $region22: #{tpu_custom_call.1} parent=15 // pred_check_branch
          %197 = sbr.rel (%p195) target = $region24
        $region23: #{tpu_custom_call.1} parent=15 // pred_region
          %s198 = sand.u32 %s84, 1
          %s199 = scalar_lea.sflag [#allocation8], %s198
          %s200 = sand.u32 %s84, 1
          %s201 = smul.addr %s200, 16
          %s202 = scalar_lea.vmem [#allocation7], %s201
          %s203 = sadd.s32 %s31, %s32
          %p204 = scmp.lt.s32.totalorder %s203, 0
          %s205 = scalar_select %p204, %s203, 0
          %s206 = smul.u32 2, %s205
          %s208 = ssub.s32 256, 256
          %209 = vsyncadd %s199, %s208
          %s210 = smul.addr %s206, 128
          %s211 = scalar_lea.hbm %s2, %s210
          %s212 = sshll.u32 %s202, 4
          %s213 = int_to_ptr.vmem [resolvable:$true] %s212
          %218 = dma.hbm_to_vmem [thread:$0]  %s211, 256, %s213, %s199, 128, 128, 8
        $region24: #{tpu_custom_call.1} parent=15 // pred_fallthru
          _
      $region16: #{tpu_custom_call.1} parent=5 // pred_fallthru
        _
      %p219 = scmp.le.s32.totalorder 1, %s24
      %p220 = scmp.lt.s32.totalorder %s24, 3
      %p221 = pnand %p219, %p220
      %p222 = pneg %p221
      // Predicated region
      $region25: #{tpu_custom_call.1} parent=5 // pred_check
        _
      $region26: #{tpu_custom_call.1} parent=5 // pred_check_branch
        %224 = sbr.rel (%p221) target = $region28
      $region27: #{tpu_custom_call.1} parent=5 // pred_region
        %s225 = ssub.s32 %s24, 1
        %s226 = sand.u32 %s55, 1
        %s227 = scalar_lea.sflag [#allocation5], %s226
        %s228 = sand.u32 %s55, 1
        %s229 = smul.addr %s228, 16
        %s230 = scalar_lea.vmem [#allocation4], %s229
        // Predicated region
        $region29: #{tpu_custom_call.1} parent=27 // pred_check
          %p231 = pneg %p68
        $region30: #{tpu_custom_call.1} parent=27 // pred_check_branch
          %233 = sbr.rel (%p231) target = $region32
        $region31: #{tpu_custom_call.1} parent=27 // pred_region
          %234 = dma.done %s227, 256
        $region32: #{tpu_custom_call.1} parent=27 // pred_fallthru
          _
        %s235 = sand.u32 %s87, 1
        %s236 = scalar_lea.sflag [#allocation8], %s235
        %s237 = sand.u32 %s87, 1
        %s238 = smul.addr %s237, 16
        %s239 = scalar_lea.vmem [#allocation7], %s238
        // Predicated region
        $region33: #{tpu_custom_call.1} parent=27 // pred_check
          %p240 = pneg %p100
        $region34: #{tpu_custom_call.1} parent=27 // pred_check_branch
          %242 = sbr.rel (%p240) target = $region36
        $region35: #{tpu_custom_call.1} parent=27 // pred_region
          %243 = dma.done %s236, 256
        $region36: #{tpu_custom_call.1} parent=27 // pred_fallthru
          _
        %s244 = sand.u32 %s55, 1
        %s245 = scalar_lea.sflag [#allocation5], %s244
        %s246 = sand.u32 %s55, 1
        %s247 = smul.addr %s246, 16
        %s248 = scalar_lea.vmem [#allocation4], %s247
        %p249 = pneg %p68
        %p250 = pneg %p65
        %s251 = sand.u32 %s87, 1
        %s252 = scalar_lea.sflag [#allocation8], %s251
        %s253 = sand.u32 %s87, 1
        %s254 = smul.addr %s253, 16
        %s255 = scalar_lea.vmem [#allocation7], %s254
        %p256 = pneg %p100
        %p257 = pneg %p97
        %p258 = pneg %p126
        %p259 = pneg %p123
        %s260 = sand.u32 %s113, 1
        %s261 = scalar_lea.sflag [#allocation6], %s260
        %s262 = sand.u32 %s113, 1
        %s263 = smul.addr %s262, 8
        %s264 = scalar_lea.vmem [#allocation9], %s263
        %p265 = pneg %p152
        %p266 = pneg %p149
        %s267 = sand.u32 %s139, 1
        %s268 = scalar_lea.sflag [#allocation11], %s267
        %s269 = sand.u32 %s139, 1
        %s270 = smul.addr %s269, 8
        %s271 = scalar_lea.vmem [#allocation10], %s270
        %s272 = sadd.s32 %s33, %s34
        %p273 = scmp.lt.s32.totalorder %s272, 0
        %s274 = scalar_select %p273, %s272, 0
        %s275 = smul.u32 2, %s274
        %s276 = sadd.s32 %s33, %s34
        %p277 = scmp.lt.s32.totalorder %s276, 0
        %s278 = scalar_select %p277, %s276, 0
        %s279 = smul.u32 2, %s278
        %p280 = scmp.eq.s32.totalorder %s34, 0
        // Predicated region
        $region37: #{tpu_custom_call.1} parent=27 // pred_check
          %p281 = pneg %p280
        $region38: #{tpu_custom_call.1} parent=27 // pred_check_branch
          %283 = sbr.rel (%p281) target = $region40
        $region39: #{tpu_custom_call.1} parent=27 // pred_region
          %284 = vst [vmem:[%s264] sm:$0xff] 0.0
          %285 = vst [vmem:[%s271] sm:$0xff] 0.0
        $region40: #{tpu_custom_call.1} parent=27 // pred_fallthru
          _
        %s286 = sadd.s32 %s33, %s34
        %s287 = smul.u32 %s286, 16
        %v288 = vlaneseq
        %v289 = vshrl.u32 %v288, 7
        %v290 = vadd.s32 %v289, 8
        %v291 = vstv %s287
        %v292 = vadd.s32 %v291, %v289
        %v293 = vadd.s32 %v291, %v290
        %s294 = sld [smem:[#allocation3]]
        %v295 = vstv %s294
        %vm296 = vcmp.lt.s32.totalorder %v292, %v295
        %vm297 = vcmp.lt.s32.totalorder %v293, %v295
        %v298 = vld [vmem:[%s230] sm:$0xff]
        %v299 = vld [vmem:[%s230 + $0x8] sm:$0xff]
        %v300 = vsel %vm296, %v298, 0.0
        %v301 = vsel %vm297, %v299, 0.0
        %v302 = vld [vmem:[%s239] sm:$0xff]
        %v303 = vld [vmem:[%s239 + $0x8] sm:$0xff]
        %v304 = vsel %vm296, %v302, 0.0
        %v305 = vsel %vm297, %v303, 0.0
        %v306 = vsub.f32 %v300, %v304
        %v307 = vsub.f32 %v301, %v305
        %v308 = vmul.f32 %v306, %v306
        %v309 = vmul.f32 %v307, %v307
        %v310 = vadd.f32 %v308, %v309
        %v311 = vand.u32 2147483647, %v300
        %v312 = vand.u32 2147483647, %v301
        %v313 = vadd.f32 %v311, %v312
        %v314 = vld [vmem:[%s264] sm:$0xff]
        %v315 = vadd.f32 %v314, %v310
        %316 = vst [vmem:[%s264] sm:$0xff] %v315
        %v317 = vld [vmem:[%s271] sm:$0xff]
        %v318 = vadd.f32 %v317, %v313
        %319 = vst [vmem:[%s271] sm:$0xff] %v318
        %s320 = sand.u32 %s113, 1
        %s321 = scalar_lea.sflag [#allocation6], %s320
        %s322 = sand.u32 %s113, 1
        %s323 = smul.addr %s322, 8
        %s324 = scalar_lea.vmem [#allocation9], %s323
        %s325 = sand.u32 %s139, 1
        %s326 = scalar_lea.sflag [#allocation11], %s325
        %s327 = sand.u32 %s139, 1
        %s328 = smul.addr %s327, 8
        %s329 = scalar_lea.vmem [#allocation10], %s328
        // Predicated region
        $region41: #{tpu_custom_call.1} parent=27 // pred_check
          %p330 = pneg %p123
        $region42: #{tpu_custom_call.1} parent=27 // pred_check_branch
          %332 = sbr.rel (%p330) target = $region44
        $region43: #{tpu_custom_call.1} parent=27 // pred_region
          %s334 = ssub.s32 128, 128
          %335 = vsyncadd %s321, %s334
          %s336 = smul.addr %s33, 128
          %s337 = scalar_lea.hbm %s3, %s336
          %s339 = sshll.u32 %s324, 4
          %s340 = int_to_ptr.vmem [resolvable:$true] %s339
          %342 = dma.vmem_to_hbm [thread:$0]  %s340, 128, %s337, %s321
        $region44: #{tpu_custom_call.1} parent=27 // pred_fallthru
          _
        // Predicated region
        $region45: #{tpu_custom_call.1} parent=27 // pred_check
          %p343 = pneg %p149
        $region46: #{tpu_custom_call.1} parent=27 // pred_check_branch
          %345 = sbr.rel (%p343) target = $region48
        $region47: #{tpu_custom_call.1} parent=27 // pred_region
          %s347 = ssub.s32 128, 128
          %348 = vsyncadd %s326, %s347
          %s349 = smul.addr %s33, 128
          %s350 = scalar_lea.hbm %s4, %s349
          %s352 = sshll.u32 %s329, 4
          %s353 = int_to_ptr.vmem [resolvable:$true] %s352
          %355 = dma.vmem_to_hbm [thread:$0]  %s353, 128, %s350, %s326
        $region48: #{tpu_custom_call.1} parent=27 // pred_fallthru
          _
      $region28: #{tpu_custom_call.1} parent=5 // pred_fallthru
        _
      %p356 = scmp.le.s32.totalorder 2, %s24
      // Predicated region
      $region49: #{tpu_custom_call.1} parent=5 // pred_check
        %p357 = pneg %p356
      $region50: #{tpu_custom_call.1} parent=5 // pred_check_branch
        %359 = sbr.rel (%p357) target = $region52
      $region51: #{tpu_custom_call.1} parent=5 // pred_region
        %s360 = ssub.s32 %s24, 2
        // Predicated region
        $region53: #{tpu_custom_call.1} parent=51 // pred_check
          %p361 = pneg %p129
        $region54: #{tpu_custom_call.1} parent=51 // pred_check_branch
          %363 = sbr.rel (%p361) target = $region56
        $region55: #{tpu_custom_call.1} parent=51 // pred_region
          %s364 = sand.u32 %s114, 1
          %s365 = scalar_lea.sflag [#allocation6], %s364
          %s366 = sand.u32 %s114, 1
          %s367 = smul.addr %s366, 8
          %s368 = scalar_lea.vmem [#allocation9], %s367
          %369 = dma.done %s365, 128
        $region56: #{tpu_custom_call.1} parent=51 // pred_fallthru
          _
        // Predicated region
        $region57: #{tpu_custom_call.1} parent=51 // pred_check
          %p370 = pneg %p155
        $region58: #{tpu_custom_call.1} parent=51 // pred_check_branch
          %372 = sbr.rel (%p370) target = $region60
        $region59: #{tpu_custom_call.1} parent=51 // pred_region
          %s373 = sand.u32 %s140, 1
          %s374 = scalar_lea.sflag [#allocation11], %s373
          %s375 = sand.u32 %s140, 1
          %s376 = smul.addr %s375, 8
          %s377 = scalar_lea.vmem [#allocation10], %s376
          %378 = dma.done %s374, 128
        $region60: #{tpu_custom_call.1} parent=51 // pred_fallthru
          _
      $region52: #{tpu_custom_call.1} parent=5 // pred_fallthru
        _
    $region6: #{tpu_custom_call.1} parent=1 // loop_footer
      %s28 = sadd.s32 1, %s24
    $region7: #{tpu_custom_call.1} parent=1 // loop_footer_branch
      %23 = sbr.rel target = $region3
    $region8: #{tpu_custom_call.1} parent=1 // loop_exit
      _
    %379 = vsyncpa [#allocation5], 1
    %s380 = scalar_lea.sflag [#allocation5], 1
    %381 = vsyncpa %s380, 1
    %382 = vsyncpa [#allocation8], 1
    %s383 = scalar_lea.sflag [#allocation8], 1
    %384 = vsyncpa %s383, 1
    %385 = vsyncpa [#allocation6], 1
    %s386 = scalar_lea.sflag [#allocation6], 1
    %387 = vsyncpa %s386, 1
    %388 = vsyncpa [#allocation11], 1
    %s389 = scalar_lea.sflag [#allocation11], 1
    %390 = vsyncpa %s389, 1

</llo_original>
